<compile_context>
chip_gen: v5e
topology: v5e:2x2
jax: 0.10.0
libtpu: 0.0.40
codegen_flags: <defaults>
</compile_context>

<pallas_src>
import functools

import jax
import jax.numpy as jnp
from jax import lax
from jax.experimental import pallas as pl
from jax.experimental.pallas import tpu as pltpu


def _round_up(x, m):
    return (x + m - 1) // m * m


def _proj_kernel(mix_ref, x_ref, w_ref, b_ref, o_ref, acc_ref, *, use_bf16_mxu):
    # mix_ref: [tm, Bp]   rows of the mixup matrix for this batch tile
    # x_ref:   [Bp, tk]   full (padded) batch, K-tile of input features
    # w_ref:   [tn, tk]   nn.Linear layout tile ([odim, idim]); NOT transposed
    # b_ref:   [1, tn]
    # o_ref:   [tm, tn]
    # acc_ref: [tm, tn]   f32 scratch accumulator (resident across K)
    k = pl.program_id(2)

    @pl.when(k == 0)
    def _init():
        acc_ref[...] = jnp.zeros_like(acc_ref)

    # Fused mixup: xm[i] = lbd*x[i] + (1-lbd)*x[perm[i]]  (tiny MXU matmul,
    # hides under the weight DMA in the memory-bound regime).
    xm = jnp.dot(mix_ref[...], x_ref[...], preferred_element_type=jnp.float32)

    w = w_ref[...]
    if use_bf16_mxu:
        # v6e / v7x MXU peak is bf16; keep the f32 accumulator.
        xm = xm.astype(jnp.bfloat16)
        w = w.astype(jnp.bfloat16)

    # xm @ W^T : contract dim 1 of xm with dim 1 of w (weight kept [odim, idim]).
    acc_ref[...] += lax.dot_general(
        xm, w,
        dimension_numbers=(((1,), (1,)), ((), ())),
        preferred_element_type=jnp.float32,
    )

    @pl.when(k == pl.num_programs(2) - 1)
    def _finalize():
        y = acc_ref[...] + b_ref[...]          # bias broadcast (1, tn) -> (tm, tn)
        o_ref[...] = jnp.maximum(y, 0.0).astype(o_ref.dtype)


def projection_forward(x, weight, bias, perm=None, lbd=None, specs=None,
                       mix_up=True, use_bf16_mxu=False):
    """x: [B, idim] f32, weight: [odim, idim] (nn.Linear layout), bias: [odim]."""
    B, idim = x.shape
    odim = weight.shape[0]

    if specs is not None:
        # TODO(synk): specs path needs 3-D inputs (cat along dim=2); unsupported here.
        raise NotImplementedError("specs path not implemented")

    eye = jnp.eye(B, dtype=jnp.float32)
    mixup_dict = None
    if mix_up:
        lbd = jnp.asarray(lbd, jnp.float32)
        perm_mat = eye[perm]                        # P[i, perm[i]] = 1
        mix = lbd * eye + (1.0 - lbd) * perm_mat    # [B, B], tiny
        mixup_dict = {"indexes": perm, "lbd": lbd}
    else:
        mix = eye

    # --- tile sizes: fit every generation (v7x 64 MiB VMEM is the tightest) ---
    tm = min(_round_up(B, 8), 256)         # batch tile (sublane axis)
    tn = min(_round_up(odim, 128), 512)    # output-feature tile (lane-dense stores)
    tk = min(_round_up(idim, 128), 512)    # reduction tile

    B_p = _round_up(B, tm)
    odim_p = _round_up(odim, tn)
    idim_p = _round_up(idim, tk)

    # Zero-pad to tile multiples ((8,128)-aligned blocks, lane-dense output).
    x_p = jnp.pad(x.astype(jnp.float32), ((0, B_p - B), (0, idim_p - idim)))
    w_p = jnp.pad(weight.astype(jnp.float32),
                  ((0, odim_p - odim), (0, idim_p - idim)))
    b_p = jnp.pad(bias.astype(jnp.float32), (0, odim_p - odim)).reshape(1, odim_p)
    mix_p = jnp.pad(mix, ((0, B_p - B), (0, B_p - B)))

    grid = (B_p // tm, odim_p // tn, idim_p // tk)

    flops = 2 * B_p * B_p * idim_p + 2 * B_p * idim_p * odim_p
    bytes_accessed = 4 * (x_p.size + w_p.size + b_p.size + mix_p.size
                          + B_p * odim_p)

    out_p = pl.pallas_call(
        functools.partial(_proj_kernel, use_bf16_mxu=use_bf16_mxu),
        out_shape=jax.ShapeDtypeStruct((B_p, odim_p), x.dtype),
        grid=grid,
        in_specs=[
            pl.BlockSpec((tm, B_p), lambda i, j, k: (i, 0)),   # mix matrix
            pl.BlockSpec((B_p, tk), lambda i, j, k: (0, k)),   # x (full batch, K tile)
            pl.BlockSpec((tn, tk), lambda i, j, k: (j, k)),    # weight [odim, idim]
            pl.BlockSpec((1, tn), lambda i, j, k: (0, j)),     # bias
        ],
        out_specs=pl.BlockSpec((tm, tn), lambda i, j, k: (i, j)),
        scratch_shapes=[pltpu.VMEM((tm, tn), jnp.float32)],
        compiler_params=pltpu.CompilerParams(
            dimension_semantics=("parallel", "parallel", "arbitrary"),
            vmem_limit_bytes=48 * 1024 * 1024,
        ),
        cost_estimate=pl.CostEstimate(
            flops=flops, transcendentals=0, bytes_accessed=bytes_accessed),
    )(mix_p, x_p, w_p, b_p)

    return out_p[:B, :odim], mixup_dict


def _reference(x, weight, bias, perm, lbd):
    xm = x * lbd + x[perm] * (1.0 - lbd)
    return jnp.maximum(xm @ weight.T + bias, 0.0)


if __name__ == "__main__":
    key = jax.random.PRNGKey(0)
    k_x, k_w, k_b, k_lbd, k_perm = jax.random.split(key, 5)

    B, idim, odim = 8, 32, 16
    x = jax.random.normal(k_x, (B, idim), dtype=jnp.float32)

    # nn.Linear(idim, odim): weight [odim, idim], bias [odim]
    bound = idim ** -0.5
    weight = jax.random.uniform(k_w, (odim, idim), jnp.float32, -bound, bound)
    bias = jax.random.uniform(k_b, (odim,), jnp.float32, -bound, bound)

    # Deterministic general derangement (randperm_diff: redraw until no fixed point).
    arange = jnp.arange(B)
    perm = jax.random.permutation(k_perm, B)
    while bool(jnp.any(perm == arange)):
        k_perm, sub = jax.random.split(k_perm)
        perm = jax.random.permutation(sub, B)

    # lbd ~ Beta(0.4, 0.4), asymmetric -> max(lbd, 1 - lbd)
    lbd = jax.random.beta(k_lbd, 0.4, 0.4)
    lbd = jnp.maximum(lbd, 1.0 - lbd).astype(jnp.float32)

    out, mix = projection_forward(x, weight, bias, perm, lbd, specs=None,
                                  mix_up=True, use_bf16_mxu=False)
    out = jax.block_until_ready(out)

    ref = _reference(x, weight, bias, perm, lbd)
    assert out.shape == (B, odim)
    assert jnp.allclose(out, ref, atol=1e-4, rtol=1e-4), "mismatch vs reference"
    print("KERNEL_OK")
</pallas_src>

<mosaic_0001>
module attributes {stable_mosaic.version = 11 : i64} {
  func.func @_proj_kernel(%arg0: i32, %arg1: i32, %arg2: i32, %arg3: memref<8x8xf32, #tpu.memory_space<vmem>>, %arg4: memref<8x128xf32, #tpu.memory_space<vmem>>, %arg5: memref<128x128xf32, #tpu.memory_space<vmem>>, %arg6: memref<1x128xf32, #tpu.memory_space<vmem>>, %arg7: memref<8x128xf32, #tpu.memory_space<vmem>>, %arg8: memref<8x128xf32, #tpu.memory_space<vmem>>) attributes {dimension_semantics = [#tpu.dimension_semantics<parallel>, #tpu.dimension_semantics<parallel>, #tpu.dimension_semantics<arbitrary>], iteration_bounds = array<i64: 1, 1, 1>, scalar_prefetch = 0 : i64, scratch_operands = 1 : i64, tpu.core_type = #tpu.core_type<tc>, window_params = [{transform_indices = @transform_0, window_bounds = array<i64: 8, 8>}, {transform_indices = @transform_1, window_bounds = array<i64: 8, 128>}, {transform_indices = @transform_2, window_bounds = array<i64: 128, 128>}, {transform_indices = @transform_3, window_bounds = array<i64: 1, 128>}, {transform_indices = @transform_4, window_bounds = array<i64: 8, 128>}]} {
    %c0_i32 = arith.constant 0 : i32
    %0 = arith.cmpi eq, %arg2, %c0_i32 : i32
    %1 = arith.extui %0 : i1 to i32
    %c0_i32_0 = arith.constant 0 : i32
    %2 = arith.cmpi ne, %1, %c0_i32_0 : i32
    scf.if %2 {
      %cst_13 = arith.constant 0.000000e+00 : f32
      %14 = vector.broadcast %cst_13 : f32 to vector<8x128xf32>
      %c0_14 = arith.constant 0 : index
      %c0_15 = arith.constant 0 : index
      %15 = vector.load %arg8[%c0_14, %c0_15] : memref<8x128xf32, #tpu.memory_space<vmem>>, vector<8x128xf32>
      tpu.vector_store %arg8[%c0_14, %c0_15], %14 {strides = array<i32>} : memref<8x128xf32, #tpu.memory_space<vmem>>, vector<8x128xf32>,
    } else {
    }
    %c0 = arith.constant 0 : index
    %c0_1 = arith.constant 0 : index
    %3 = vector.load %arg3[%c0, %c0_1] : memref<8x8xf32, #tpu.memory_space<vmem>>, vector<8x8xf32>
    %c0_2 = arith.constant 0 : index
    %c0_3 = arith.constant 0 : index
    %4 = vector.load %arg4[%c0_2, %c0_3] : memref<8x128xf32, #tpu.memory_space<vmem>>, vector<8x128xf32>
    %cst = arith.constant dense<0.000000e+00> : vector<8x128xf32>
    %5 = tpu.matmul %3, %4, %cst {dimension_numbers = #tpu.dot_dimension_numbers<[1], [0], [0], [1], [0, 0, 1, 1], [], []>} : vector<8x8xf32>, vector<8x128xf32>, vector<8x128xf32> -> vector<8x128xf32>
    %c0_4 = arith.constant 0 : index
    %c0_5 = arith.constant 0 : index
    %6 = vector.load %arg5[%c0_4, %c0_5] : memref<128x128xf32, #tpu.memory_space<vmem>>, vector<128x128xf32>
    %c0_6 = arith.constant 0 : index
    %c0_7 = arith.constant 0 : index
    %7 = vector.load %arg8[%c0_6, %c0_7] : memref<8x128xf32, #tpu.memory_space<vmem>>, vector<8x128xf32>
    %cst_8 = arith.constant dense<0.000000e+00> : vector<8x128xf32>
    %8 = tpu.matmul %5, %6, %cst_8 {dimension_numbers = #tpu.dot_dimension_numbers<[1], [1], [0], [0], [0, 0, 1, 0], [], []>} : vector<8x128xf32>, vector<128x128xf32>, vector<8x128xf32> -> vector<8x128xf32>
    %9 = arith.addf %7, %8 : vector<8x128xf32>
    %c0_9 = arith.constant 0 : index
    %c0_10 = arith.constant 0 : index
    %10 = vector.load %arg8[%c0_9, %c0_10] : memref<8x128xf32, #tpu.memory_space<vmem>>, vector<8x128xf32>
    tpu.vector_store %arg8[%c0_9, %c0_10], %9 {strides = array<i32>} : memref<8x128xf32, #tpu.memory_space<vmem>>, vector<8x128xf32>,
    %c0_i32_11 = arith.constant 0 : i32
    %11 = arith.cmpi eq, %arg2, %c0_i32_11 : i32
    %12 = arith.extui %11 : i1 to i32
    %c0_i32_12 = arith.constant 0 : i32
    %13 = arith.cmpi ne, %12, %c0_i32_12 : i32
    scf.if %13 {
      %c0_13 = arith.constant 0 : index
      %c0_14 = arith.constant 0 : index
      %14 = vector.load %arg8[%c0_13, %c0_14] : memref<8x128xf32, #tpu.memory_space<vmem>>, vector<8x128xf32>
      %c0_15 = arith.constant 0 : index
      %c0_16 = arith.constant 0 : index
      %15 = vector.load %arg6[%c0_15, %c0_16] : memref<1x128xf32, #tpu.memory_space<vmem>>, vector<1x128xf32>
      %16 = vector.broadcast %15 : vector<1x128xf32> to vector<8x128xf32>
      %17 = arith.addf %14, %16 : vector<8x128xf32>
      %cst_17 = arith.constant 0.000000e+00 : f32
      %18 = vector.broadcast %cst_17 : f32 to vector<8x128xf32>
      %19 = arith.maximumf %17, %18 : vector<8x128xf32>
      %c0_18 = arith.constant 0 : index
      %c0_19 = arith.constant 0 : index
      %20 = vector.load %arg7[%c0_18, %c0_19] : memref<8x128xf32, #tpu.memory_space<vmem>>, vector<8x128xf32>
      tpu.vector_store %arg7[%c0_18, %c0_19], %19 {strides = array<i32>} : memref<8x128xf32, #tpu.memory_space<vmem>>, vector<8x128xf32>,
    } else {
    }
    return
  }
  func.func @transform_0(%arg0: i32, %arg1: i32, %arg2: i32) -> (i32, i32) {
    %c0_i32 = arith.constant 0 : i32
    %c0_i32_0 = arith.constant 0 : i32
    return %arg0, %c0_i32 : i32, i32
  }
  func.func @transform_1(%arg0: i32, %arg1: i32, %arg2: i32) -> (i32, i32) {
    %c0_i32 = arith.constant 0 : i32
    %c0_i32_0 = arith.constant 0 : i32
    return %c0_i32, %arg2 : i32, i32
  }
  func.func @transform_2(%arg0: i32, %arg1: i32, %arg2: i32) -> (i32, i32) {
    %c0_i32 = arith.constant 0 : i32
    return %arg1, %arg2 : i32, i32
  }
  func.func @transform_3(%arg0: i32, %arg1: i32, %arg2: i32) -> (i32, i32) {
    %c0_i32 = arith.constant 0 : i32
    %c0_i32_0 = arith.constant 0 : i32
    return %c0_i32, %arg1 : i32, i32
  }
  func.func @transform_4(%arg0: i32, %arg1: i32, %arg2: i32) -> (i32, i32) {
    %c0_i32 = arith.constant 0 : i32
    return %arg0, %arg1 : i32, i32
  }
}

</mosaic_0001>

<llo_original>
// kernel: tpu_custom_call.1
$region0: #{tpu_custom_call.1}
  #allocation0 [shape = 'u32[]', space=smem, size = 0x4, offset = 0x4, fixed_abs, tag = 'smem constant byte address 0x4 - core index']
  #allocation1 [shape = 'u32[72,128]{1,0:T(1,128)}', space=vmem, size = 0x9000, scoped, tag = 'internal scratch']
  #allocation2 [shape = 'f32[8,128]{1,0:T(8,128)}', space=vmem, size = 0x1000, scoped, tag = 'scratch operand']
  %s0 = inlined_call_operand.hbm [shape: f32[8,8], index: 0, kind: input, shape index: {}]
  %s1 = inlined_call_operand.hbm [shape: f32[8,128], index: 1, kind: input, shape index: {}]
  %s2 = inlined_call_operand.hbm [shape: f32[128,128], index: 2, kind: input, shape index: {}]
  %s3 = inlined_call_operand.vmem [shape: f32[1,128], index: 3, kind: input, shape index: {}]
  %s4 = inlined_call_operand.hbm [shape: f32[8,128], index: 4, kind: output, shape index: {}]
  %s5 = sld [smem:[#allocation0]]
  $region46: #{tpu_custom_call.1} parent=0
    _
  %s7 = ssub.s32 1, %s5
  %s8 = scalar_select 0, %s7, %s5
  $region1: #{tpu_custom_call.1} parent=0
    #allocation3 [shape = 'u8[4096]{0}', space=vmem, size = 0x1000, scoped, tag = 'input window, operand 0, single buffered']
    #allocation4 [shape = 's32[1]{0}', space=sflag, size = 0x4, scoped, tag = 'scoped memory for tpu_custom_call.1']
    #allocation5 [shape = 's32[1]{0}', space=sflag, size = 0x4, scoped, tag = 'scoped memory for tpu_custom_call.1']
    #allocation6 [shape = 'u8[4096]{0}', space=vmem, size = 0x1000, scoped, tag = 'input window, operand 1, single buffered']
    #allocation7 [shape = 's32[1]{0}', space=sflag, size = 0x4, scoped, tag = 'scoped memory for tpu_custom_call.1']
    #allocation8 [shape = 'u8[65536]{0}', space=vmem, size = 0x10000, scoped, tag = 'input window, operand 2, single buffered']
    #allocation9 [shape = 'u8[4096]{0}', space=vmem, size = 0x1000, scoped, tag = 'output window, operand 0, single buffered']
    %9 = vsyncpa [#allocation4], 0
    %10 = vsyncpa [#allocation7], 0
    %11 = vsyncpa [#allocation5], 0
    // Predicated region
    $region2: #{tpu_custom_call.1} parent=1 // pred_check
      _
    $region3: #{tpu_custom_call.1} parent=1 // pred_check_branch
      %13 = sbr.rel (0) target = $region5
    $region4: #{tpu_custom_call.1} parent=1 // pred_region
      %15 = vsyncadd [#allocation4], 0
      %s17 = sshll.u32 %s0, 4
      %s18 = int_to_ptr.hbm [resolvable:$true] %s17
      %s19 = sshll.u32 [#allocation3], 4
      %s20 = int_to_ptr.vmem [resolvable:$true] %s19
      %22 = dma.hbm_to_vmem [thread:$0]  %s18, 128, %s20, [#allocation4]
    $region5: #{tpu_custom_call.1} parent=1 // pred_fallthru
      _
    // Predicated region
    $region6: #{tpu_custom_call.1} parent=1 // pred_check
      _
    $region7: #{tpu_custom_call.1} parent=1 // pred_check_branch
      %24 = sbr.rel (0) target = $region9
    $region8: #{tpu_custom_call.1} parent=1 // pred_region
      %26 = vsyncadd [#allocation7], 0
      %s28 = sshll.u32 %s1, 4
      %s29 = int_to_ptr.hbm [resolvable:$true] %s28
      %s30 = sshll.u32 [#allocation6], 4
      %s31 = int_to_ptr.vmem [resolvable:$true] %s30
      %33 = dma.hbm_to_vmem [thread:$0]  %s29, 128, %s31, [#allocation7]
    $region9: #{tpu_custom_call.1} parent=1 // pred_fallthru
      _
    // Predicated region
    $region10: #{tpu_custom_call.1} parent=1 // pred_check
      _
    $region11: #{tpu_custom_call.1} parent=1 // pred_check_branch
      %35 = sbr.rel (0) target = $region13
    $region12: #{tpu_custom_call.1} parent=1 // pred_region
      %37 = vsyncadd [#allocation7], 0
      %s38 = sshll.u32 %s2, 4
      %s39 = int_to_ptr.hbm [resolvable:$true] %s38
      %s40 = sshll.u32 [#allocation8], 4
      %s41 = int_to_ptr.vmem [resolvable:$true] %s40
      %46 = dma.hbm_to_vmem [thread:$0]  %s39, 2048, %s41, [#allocation7], 128, 128, 8
    $region13: #{tpu_custom_call.1} parent=1 // pred_fallthru
      _
    // Predicated region
    $region14: #{tpu_custom_call.1} parent=1 // pred_check
      _
    $region15: #{tpu_custom_call.1} parent=1 // pred_check_branch
      %48 = sbr.rel (0) target = $region17
    $region16: #{tpu_custom_call.1} parent=1 // pred_region
      _
    $region17: #{tpu_custom_call.1} parent=1 // pred_fallthru
      _
    // Predicated region
    $region18: #{tpu_custom_call.1} parent=1 // pred_check
      _
    $region19: #{tpu_custom_call.1} parent=1 // pred_check_branch
      %50 = sbr.rel (0) target = $region21
    $region20: #{tpu_custom_call.1} parent=1 // pred_region
      %52 = dma.done [#allocation4], 128
    $region21: #{tpu_custom_call.1} parent=1 // pred_fallthru
      _
    // Predicated region
    $region22: #{tpu_custom_call.1} parent=1 // pred_check
      _
    $region23: #{tpu_custom_call.1} parent=1 // pred_check_branch
      %54 = sbr.rel (0) target = $region25
    $region24: #{tpu_custom_call.1} parent=1 // pred_region
      %56 = dma.done [#allocation7], 128
    $region25: #{tpu_custom_call.1} parent=1 // pred_fallthru
      _
    // Predicated region
    $region26: #{tpu_custom_call.1} parent=1 // pred_check
      _
    $region27: #{tpu_custom_call.1} parent=1 // pred_check_branch
      %58 = sbr.rel (0) target = $region29
    $region28: #{tpu_custom_call.1} parent=1 // pred_region
      %60 = dma.done [#allocation7], 2048
    $region29: #{tpu_custom_call.1} parent=1 // pred_fallthru
      _
    %p61 = scmp.eq.s32.totalorder 0, 0
    // Predicated region
    $region30: #{tpu_custom_call.1} parent=1 // pred_check
      %p62 = pneg %p61
    $region31: #{tpu_custom_call.1} parent=1 // pred_check_branch
      %64 = sbr.rel (%p62) target = $region33
    $region32: #{tpu_custom_call.1} parent=1 // pred_region
      %65 = vst [vmem:[#allocation2] sm:$0xff] 0.0
    $region33: #{tpu_custom_call.1} parent=1 // pred_fallthru
      _
    %v66 = vld [vmem:[#allocation3] sm:$0xff]
    %v67 = vld [vmem:[#allocation6] sm:$0xff]
    %vm68 = vcmask 64512
    %v70 = vsel %vm68, %v66, 0
    %72 = vmatpush.msra.mxu0 0.0
    %73 = vmatpush.msra.mxu0 0.0
    %74 = vmatpush.msra.mxu0 0.0
    %75 = vmatpush.msra.mxu0 0.0
    %76 = vmatpush.msra.mxu0 0.0
    %77 = vmatpush.msra.mxu0 0.0
    %78 = vmatpush.msra.mxu0 0.0
    %79 = vmatpush.msra.mxu0 0.0
    %80 = vmatpush.msra.mxu0 0.0
    %81 = vmatpush.msra.mxu0 0.0
    %82 = vmatpush.msra.mxu0 0.0
    %83 = vmatpush.msra.mxu0 0.0
    %84 = vmatpush.msra.mxu0 0.0
    %85 = vmatpush.msra.mxu0 0.0
    %86 = vmatpush.msra.mxu0 0.0
    %87 = vmatpush.msra.mxu0 %v67
    %88 = vmatmul.f32.gmra.mxu0 %v70
    %v89 = vpop.f32.mrf.mxu0
    %v90 = vadd.f32 0.0, %v89
    %91 = vdwg.mxu0
    %v92 = vld [vmem:[#allocation8] sm:$0xff]
    %v93 = vld [vmem:[#allocation8 + $0x8] sm:$0xff]
    %v94 = vld [vmem:[#allocation8 + $0x10] sm:$0xff]
    %v95 = vld [vmem:[#allocation8 + $0x18] sm:$0xff]
    %v96 = vld [vmem:[#allocation8 + $0x20] sm:$0xff]
    %v97 = vld [vmem:[#allocation8 + $0x28] sm:$0xff]
    %v98 = vld [vmem:[#allocation8 + $0x30] sm:$0xff]
    %v99 = vld [vmem:[#allocation8 + $0x38] sm:$0xff]
    %v100 = vld [vmem:[#allocation8 + $0x40] sm:$0xff]
    %v101 = vld [vmem:[#allocation8 + $0x48] sm:$0xff]
    %v102 = vld [vmem:[#allocation8 + $0x50] sm:$0xff]
    %v103 = vld [vmem:[#allocation8 + $0x58] sm:$0xff]
    %v104 = vld [vmem:[#allocation8 + $0x60] sm:$0xff]
    %v105 = vld [vmem:[#allocation8 + $0x68] sm:$0xff]
    %v106 = vld [vmem:[#allocation8 + $0x70] sm:$0xff]
    %v107 = vld [vmem:[#allocation8 + $0x78] sm:$0xff]
    %v108 = vld [vmem:[#allocation2] sm:$0xff]
    %109 = vmatpush.xpose.msra.mxu0 %v107
    %110 = vmatpush.xpose.msra.mxu0 %v106
    %111 = vmatpush.xpose.msra.mxu0 %v105
    %112 = vmatpush.xpose.msra.mxu0 %v104
    %113 = vmatpush.xpose.msra.mxu0 %v103
    %114 = vmatpush.xpose.msra.mxu0 %v102
    %115 = vmatpush.xpose.msra.mxu0 %v101
    %116 = vmatpush.xpose.msra.mxu0 %v100
    %117 = vmatpush.xpose.msra.mxu0 %v99
    %118 = vmatpush.xpose.msra.mxu0 %v98
    %119 = vmatpush.xpose.msra.mxu0 %v97
    %120 = vmatpush.xpose.msra.mxu0 %v96
    %121 = vmatpush.xpose.msra.mxu0 %v95
    %122 = vmatpush.xpose.msra.mxu0 %v94
    %123 = vmatpush.xpose.msra.mxu0 %v93
    %124 = vmatpush.xpose.msra.mxu0 %v92
    %125 = vmatmul.f32.gmra.mxu0 %v90
    %v126 = vpop.f32.mrf.mxu0
    %v127 = vadd.f32 0.0, %v126
    %128 = vdwg.mxu0
    %v129 = vadd.f32 %v108, %v127
    %130 = vst [vmem:[#allocation2] sm:$0xff] %v129
    // Predicated region
    $region34: #{tpu_custom_call.1} parent=1 // pred_check
      %p131 = pneg %p61
    $region35: #{tpu_custom_call.1} parent=1 // pred_check_branch
      %133 = sbr.rel (%p131) target = $region37
    $region36: #{tpu_custom_call.1} parent=1 // pred_region
      %v134 = vld [vmem:[#allocation2] sm:$0xff]
      %v135 = vld [vmem:[%s3] sm:$0x1]
      %v137 = vperm.slane %v135, 0
      %v139 = vadd.f32 %v134, %v137
      %v140 = vmax.f32 %v139, 0.0
      %141 = vst [vmem:[#allocation9] sm:$0xff] %v140
    $region37: #{tpu_custom_call.1} parent=1 // pred_fallthru
      _
    // Predicated region
    $region38: #{tpu_custom_call.1} parent=1 // pred_check
      _
    $region39: #{tpu_custom_call.1} parent=1 // pred_check_branch
      %143 = sbr.rel (0) target = $region41
    $region40: #{tpu_custom_call.1} parent=1 // pred_region
      %145 = vsyncadd [#allocation5], 0
      %s147 = sshll.u32 [#allocation9], 4
      %s148 = int_to_ptr.vmem [resolvable:$true] %s147
      %s149 = sshll.u32 %s4, 4
      %s150 = int_to_ptr.hbm [resolvable:$true] %s149
      %152 = dma.vmem_to_hbm [thread:$0]  %s148, 128, %s150, [#allocation5]
    $region41: #{tpu_custom_call.1} parent=1 // pred_fallthru
      _
    // Predicated region
    $region42: #{tpu_custom_call.1} parent=1 // pred_check
      _
    $region43: #{tpu_custom_call.1} parent=1 // pred_check_branch
      %154 = sbr.rel (0) target = $region45
    $region44: #{tpu_custom_call.1} parent=1 // pred_region
      %156 = dma.done [#allocation5], 128
    $region45: #{tpu_custom_call.1} parent=1 // pred_fallthru
      _
    %157 = vsyncpa [#allocation4], 1
    %158 = vsyncpa [#allocation7], 1
    %159 = vsyncpa [#allocation5], 1

</llo_original>
